<compile_context>
chip_gen: v5e
topology: v5e:2x2
jax: 0.10.0
libtpu: 0.0.40
codegen_flags: <defaults>
</compile_context>

<pallas_src>
import functools

import jax
import jax.numpy as jnp
from jax import lax
from jax.experimental import pallas as pl
from jax.experimental.pallas import tpu as pltpu


_MIB = 1024 * 1024
# TODO(synk): per-chip crossover tuning (lower on v5e's weaker MXU, higher on v6e).
_FAST_PATH_MAX_USERS = 16384


def _round_up(x: int, m: int) -> int:
    return (x + m - 1) // m * m


def _vmem_capacity_bytes() -> int:
    """Physical VMEM per core (v5e/v6e: 128 MiB, v7x: 64 MiB); safe fallback."""
    try:
        return int(pltpu.get_tpu_info().vmem_capacity_bytes)
    except Exception:
        return 64 * _MIB


# --------------------------------------------------------------------------
# Fast path: whole (padded) table resident in VMEM; gather is a one-hot MXU
# matmul, chunked over the user axis so the one-hot stays small.
# --------------------------------------------------------------------------
def _onehot_gather_kernel(idx_ref, w_ref, out_ref, *, u_tile):
    tb, emb = out_ref.shape
    n_u = w_ref.shape[0] // u_tile           # static
    idx = idx_ref[...]                        # (tb, 1) int32

    def body(u, acc):
        base = pl.multiple_of(u * u_tile, u_tile)
        col = lax.broadcasted_iota(jnp.int32, (tb, u_tile), 1) + base
        onehot = (idx == col).astype(w_ref.dtype)            # (tb, u_tile)
        w_tile = w_ref[pl.ds(base, u_tile), :]                # (u_tile, emb)
        return acc + jnp.dot(onehot, w_tile, preferred_element_type=jnp.float32)

    acc = lax.fori_loop(0, n_u, body, jnp.zeros((tb, emb), jnp.float32))
    out_ref[...] = acc.astype(out_ref.dtype)


# --------------------------------------------------------------------------
# General path: weight stays in HBM; TB single-row async copies per block are
# issued straight into the pipelined output block, then one bulk wait.
# --------------------------------------------------------------------------
def _hbm_gather_kernel(idx_ref, w_hbm, out_ref, sem):
    i = pl.program_id(0)
    tb = out_ref.shape[0]
    base = i * tb

    def issue(t, carry):
        row = idx_ref[base + t]
        pltpu.make_async_copy(w_hbm.at[row], out_ref.at[t], sem.at[0]).start()
        return carry

    # Unrolled issue loop: pack .start()s into bundles, many DMAs in flight.
    lax.fori_loop(0, tb, issue, 0, unroll=8)

    # One bulk wait: descriptor sized to all tb rows (sem counts bytes), so the
    # drain is a single wait instead of tb sequential waits.
    if w_hbm.shape[0] >= tb:
        wait_src = w_hbm.at[pl.ds(0, tb)]
    else:  # tiny table edge case: use out_ref for an exactly-sized descriptor
        wait_src = out_ref
    pltpu.make_async_copy(wait_src, out_ref, sem.at[0]).wait()


# --------------------------------------------------------------------------
# Wrapper
# --------------------------------------------------------------------------
def user_embedding_lookup(weight: jax.Array, user_inputs: jax.Array,
                          *, force_hbm_gather: bool = False) -> jax.Array:
    """Pallas equivalent of nn.Embedding(num_users, embedding_dim)(user_inputs)."""
    num_users, emb_dim = weight.shape
    in_shape = user_inputs.shape
    itemsize = jnp.dtype(weight.dtype).itemsize

    flat_idx = user_inputs.reshape(-1).astype(jnp.int32)
    # torch nn.Embedding raises on out-of-range ids; clamp so an OOB id can
    # never drive an out-of-bounds DMA (documented divergence).
    flat_idx = jnp.clip(flat_idx, 0, num_users - 1)
    n = flat_idx.shape[0]

    # Token-block size: sublane-dense and large enough to amortize per-step
    # overhead (8 for f32, 16 for bf16, 32 for int8).
    sub = max(8, 32 // max(itemsize, 1))
    tb = 256 if n >= 256 else _round_up(max(n, sub), sub)
    n_pad = _round_up(n, tb)
    num_blocks = n_pad // tb
    if n_pad != n:
        flat_idx = jnp.pad(flat_idx, (0, n_pad - n))   # pad with id 0 (valid)

    vmem_cap = _vmem_capacity_bytes()
    vmem_headroom = 8 * _MIB                 # never request all of physical VMEM

    # ---- fast-path sizing (lane/sublane-dense padded table) ----------------
    emb_pad = _round_up(emb_dim, 128)
    u_tile = min(512, _round_up(num_users, 128))
    u_pad = _round_up(num_users, u_tile)
    table_pad_bytes = u_pad * emb_pad * itemsize
    fast_vmem_need = (
        2 * table_pad_bytes                 # constant block may be double-buffered
        + 2 * tb * emb_pad * itemsize       # double-buffered output blocks
        + tb * emb_pad * 4                  # f32 accumulator (regs + spill)
        + 2 * tb * u_tile * 4               # one-hot / iota chunk temporaries
        + 2 * tb * 4                        # double-buffered idx blocks
        + 2 * _MIB)                         # slack / internal scratch

    use_fast = (not force_hbm_gather
                and num_users <= _FAST_PATH_MAX_USERS
                and fast_vmem_need <= vmem_cap - vmem_headroom)

    if use_fast:
        w_pad = weight
        if (u_pad, emb_pad) != (num_users, emb_dim):
            w_pad = jnp.pad(weight,
                            ((0, u_pad - num_users), (0, emb_pad - emb_dim)))
        idx2d = flat_idx.reshape(n_pad, 1)
        vmem_limit = int(min(max(fast_vmem_need, 16 * _MIB),
                             vmem_cap - vmem_headroom))
        out_flat = pl.pallas_call(
            functools.partial(_onehot_gather_kernel, u_tile=u_tile),
            out_shape=jax.ShapeDtypeStruct((n_pad, emb_pad), weight.dtype),
            grid_spec=pltpu.PrefetchScalarGridSpec(
                num_scalar_prefetch=0,
                grid=(num_blocks,),
                in_specs=[
                    pl.BlockSpec((tb, 1), lambda i: (i, 0)),             # ids
                    pl.BlockSpec((u_pad, emb_pad), lambda i: (0, 0)),    # table
                ],
                out_specs=pl.BlockSpec((tb, emb_pad), lambda i: (i, 0)),
            ),
            compiler_params=pltpu.CompilerParams(
                dimension_semantics=("parallel",),   # blocks independent (v7x 2 TCs)
                vmem_limit_bytes=vmem_limit,
            ),
            cost_estimate=pl.CostEstimate(
                flops=2 * n_pad * u_pad * emb_pad,
                transcendentals=0,
                bytes_accessed=table_pad_bytes + n_pad * 4
                               + n_pad * emb_pad * itemsize,
            ),
        )(idx2d, w_pad)
        if emb_pad != emb_dim:
            out_flat = out_flat[:, :emb_dim]
    else:
        hbm_vmem_need = 2 * tb * emb_dim * itemsize + 4 * _MIB
        vmem_limit = int(min(max(hbm_vmem_need, 16 * _MIB),
                             vmem_cap - vmem_headroom))
        # TODO(synk): for very large n, tile the index array per block instead
        # of scalar-prefetching all of it into SMEM.
        out_flat = pl.pallas_call(
            _hbm_gather_kernel,
            out_shape=jax.ShapeDtypeStruct((n_pad, emb_dim), weight.dtype),
            grid_spec=pltpu.PrefetchScalarGridSpec(
                num_scalar_prefetch=1,                          # flat ids -> SMEM
                grid=(num_blocks,),
                in_specs=[pl.BlockSpec(memory_space=pl.ANY)],   # weight stays in HBM
                out_specs=pl.BlockSpec((tb, emb_dim), lambda i, idx: (i, 0)),
                scratch_shapes=[pltpu.SemaphoreType.DMA((1,))],
            ),
            compiler_params=pltpu.CompilerParams(
                # no cross-step state anymore -> blocks are independent; v7x
                # can shard them across both TensorCores.
                dimension_semantics=("parallel",),
                vmem_limit_bytes=vmem_limit,
            ),
            cost_estimate=pl.CostEstimate(
                flops=0,
                transcendentals=0,
                bytes_accessed=2 * n_pad * emb_dim * itemsize + n_pad * 4,
            ),
        )(flat_idx, weight)

    return out_flat[:n].reshape(*in_shape, emb_dim)


def make_user_embedding_params(num_users: int, embedding_dim: int, key) -> jax.Array:
    # Deterministic init mimicking nn.Embedding default: N(0, 1).
    return jax.random.normal(key, (num_users, embedding_dim), dtype=jnp.float32)


if __name__ == "__main__":
    key = jax.random.PRNGKey(0)
    k_w, k_idx = jax.random.split(key)

    num_users = 64
    embedding_dim = 128
    batch, seq = 2, 8

    weight = make_user_embedding_params(num_users, embedding_dim, k_w)
    user_inputs = jax.random.randint(k_idx, (batch, seq), 0, num_users, dtype=jnp.int32)
    ref = weight[user_inputs]

    # Fast path (table-resident chunked one-hot MXU gather).
    out = jax.block_until_ready(user_embedding_lookup(weight, user_inputs))
    assert out.shape == (batch, seq, embedding_dim)
    assert jnp.allclose(out, ref), "fast-path mismatch"

    # General path (manual HBM row-gather DMA, bulk wait), forced, same inputs.
    out_hbm = jax.block_until_ready(
        user_embedding_lookup(weight, user_inputs, force_hbm_gather=True))
    assert jnp.allclose(out_hbm, ref), "hbm-gather mismatch"

    # Multi-block case (padding, multiple grid steps, non-pow2 table).
    k_w2, k_idx2 = jax.random.split(jax.random.PRNGKey(0))
    w2 = jax.random.normal(k_w2, (300, 128), dtype=jnp.float32)
    idx2 = jax.random.randint(k_idx2, (4, 100), 0, 300, dtype=jnp.int32)
    ref2 = w2[idx2]
    o2a = jax.block_until_ready(user_embedding_lookup(w2, idx2))
    o2b = jax.block_until_ready(user_embedding_lookup(w2, idx2, force_hbm_gather=True))
    assert jnp.allclose(o2a, ref2), "fast-path (multi-block) mismatch"
    assert jnp.allclose(o2b, ref2), "hbm-gather (multi-block) mismatch"

    print("KERNEL_OK")
</pallas_src>

<mosaic_0001>
module attributes {stable_mosaic.version = 11 : i64} {
  func.func @_onehot_gather_kernel(%arg0: i32, %arg1: memref<16x1xi32, #tpu.memory_space<vmem>>, %arg2: memref<128x128xf32, #tpu.memory_space<vmem>>, %arg3: memref<16x128xf32, #tpu.memory_space<vmem>>) attributes {dimension_semantics = [#tpu.dimension_semantics<parallel>], iteration_bounds = array<i64: 1>, scalar_prefetch = 0 : i64, scratch_operands = 0 : i64, tpu.core_type = #tpu.core_type<tc>, window_params = [{transform_indices = @transform_0, window_bounds = array<i64: 16, 1>}, {pipeline_mode = #tpu.pipeline_mode<synchronous>, transform_indices = @transform_1, window_bounds = array<i64: 128, 128>}, {transform_indices = @transform_2, window_bounds = array<i64: 16, 128>}]} {
    %c0 = arith.constant 0 : index
    %c0_0 = arith.constant 0 : index
    %0 = vector.load %arg1[%c0, %c0_0] : memref<16x1xi32, #tpu.memory_space<vmem>>, vector<16x1xi32>
    %cst = arith.constant 0.000000e+00 : f32
    %1 = vector.broadcast %cst : f32 to vector<16x128xf32>
    %c0_i32 = arith.constant 0 : i32
    %c128_i32 = arith.constant 128 : i32
    %2 = arith.muli %c0_i32, %c128_i32 : i32
    %3 = tpu.assume_multiple %2, 128 : i32
    %4 = tpu.iota {dimensions = array<i32: 1>} : vector<16x128xi32>
    %5 = vector.broadcast %3 : i32 to vector<16x128xi32>
    %6 = arith.addi %4, %5 : vector<16x128xi32>
    %7 = vector.broadcast %0 : vector<16x1xi32> to vector<16x128xi32>
    %8 = arith.cmpi eq, %7, %6 : vector<16x128xi32>
    %9 = arith.extui %8 : vector<16x128xi1> to vector<16x128xi32>
    %10 = arith.sitofp %9 : vector<16x128xi32> to vector<16x128xf32>
    %11 = arith.index_cast %3 : i32 to index
    %c0_1 = arith.constant 0 : index
    %12 = vector.load %arg2[%11, %c0_1] : memref<128x128xf32, #tpu.memory_space<vmem>>, vector<128x128xf32>
    %cst_2 = arith.constant dense<0.000000e+00> : vector<16x128xf32>
    %13 = tpu.matmul %10, %12, %cst_2 {dimension_numbers = #tpu.dot_dimension_numbers<[1], [0], [0], [1], [0, 0, 1, 1], [], []>} : vector<16x128xf32>, vector<128x128xf32>, vector<16x128xf32> -> vector<16x128xf32>
    %14 = arith.addf %1, %13 : vector<16x128xf32>
    %c1_i32 = arith.constant 1 : i32
    %c0_3 = arith.constant 0 : index
    %c0_4 = arith.constant 0 : index
    %15 = vector.load %arg3[%c0_3, %c0_4] : memref<16x128xf32, #tpu.memory_space<vmem>>, vector<16x128xf32>
    tpu.vector_store %arg3[%c0_3, %c0_4], %14 {strides = array<i32>} : memref<16x128xf32, #tpu.memory_space<vmem>>, vector<16x128xf32>,
    return
  }
  func.func @transform_0(%arg0: i32) -> (i32, i32) {
    %c0_i32 = arith.constant 0 : i32
    %c0_i32_0 = arith.constant 0 : i32
    return %arg0, %c0_i32 : i32, i32
  }
  func.func @transform_1(%arg0: i32) -> (i32, i32) {
    %c0_i32 = arith.constant 0 : i32
    %c0_i32_0 = arith.constant 0 : i32
    %c0_i32_1 = arith.constant 0 : i32
    return %c0_i32, %c0_i32_0 : i32, i32
  }
  func.func @transform_2(%arg0: i32) -> (i32, i32) {
    %c0_i32 = arith.constant 0 : i32
    %c0_i32_0 = arith.constant 0 : i32
    return %arg0, %c0_i32 : i32, i32
  }
}

</mosaic_0001>

<llo_original>
// kernel: tpu_custom_call.1
$region0: #{tpu_custom_call.1}
  #allocation0 [shape = 'u32[]', space=smem, size = 0x4, offset = 0x4, fixed_abs, tag = 'smem constant byte address 0x4 - core index']
  #allocation1 [shape = 'u32[72,128]{1,0:T(1,128)}', space=vmem, size = 0x9000, scoped, tag = 'internal scratch']
  %s0 = inlined_call_operand.vmem [shape: s32[16,1], index: 0, kind: input, shape index: {}]
  %s1 = inlined_call_operand.hbm [shape: f32[128,128], index: 1, kind: input, shape index: {}]
  %s2 = inlined_call_operand.hbm [shape: f32[16,128], index: 2, kind: output, shape index: {}]
  %s3 = sld [smem:[#allocation0]]
  $region22: #{tpu_custom_call.1} parent=0
    _
  %s5 = ssub.s32 1, %s3
  %s6 = scalar_select 0, %s5, %s3
  $region1: #{tpu_custom_call.1} parent=0
    #allocation2 [shape = 'u8[65536]{0}', space=vmem, size = 0x10000, scoped, tag = 'input window, operand 1, single buffered']
    #allocation3 [shape = 's32[1]{0}', space=sflag, size = 0x4, scoped, tag = 'scoped memory for tpu_custom_call.1']
    #allocation4 [shape = 's32[1]{0}', space=sflag, size = 0x4, scoped, tag = 'scoped memory for tpu_custom_call.1']
    #allocation5 [shape = 'u8[8192]{0}', space=vmem, size = 0x2000, scoped, tag = 'output window, operand 0, single buffered']
    %7 = vsyncpa [#allocation3], 0
    %8 = vsyncpa [#allocation4], 0
    // Predicated region
    $region2: #{tpu_custom_call.1} parent=1 // pred_check
      _
    $region3: #{tpu_custom_call.1} parent=1 // pred_check_branch
      %10 = sbr.rel (0) target = $region5
    $region4: #{tpu_custom_call.1} parent=1 // pred_region
      _
    $region5: #{tpu_custom_call.1} parent=1 // pred_fallthru
      _
    // Predicated region
    $region6: #{tpu_custom_call.1} parent=1 // pred_check
      _
    $region7: #{tpu_custom_call.1} parent=1 // pred_check_branch
      %12 = sbr.rel (0) target = $region9
    $region8: #{tpu_custom_call.1} parent=1 // pred_region
      %14 = vsyncadd [#allocation3], 0
      %s15 = sshll.u32 %s1, 4
      %s16 = int_to_ptr.hbm [resolvable:$true] %s15
      %s17 = sshll.u32 [#allocation2], 4
      %s18 = int_to_ptr.vmem [resolvable:$true] %s17
      %23 = dma.hbm_to_vmem [thread:$0]  %s16, 2048, %s18, [#allocation3], 128, 128, 8
    $region9: #{tpu_custom_call.1} parent=1 // pred_fallthru
      _
    // Predicated region
    $region10: #{tpu_custom_call.1} parent=1 // pred_check
      _
    $region11: #{tpu_custom_call.1} parent=1 // pred_check_branch
      %25 = sbr.rel (0) target = $region13
    $region12: #{tpu_custom_call.1} parent=1 // pred_region
      %27 = dma.done [#allocation3], 2048
    $region13: #{tpu_custom_call.1} parent=1 // pred_fallthru
      _
    %v28 = vld [vmem:[%s0] sm:$0xff]
    %v29 = vld [vmem:[%s0 + $0x8] sm:$0xff]
    %v30 = vlaneseq
    %v31 = vand.u32 %v30, 127
    %v32 = vstv 0
    %v33 = vadd.s32 %v31, %v32
    %34 = vset.pattern.permute.xlu0 0
    %35 = vperm.xlu0 %34, %v28
    %v36 = vpop.permute.xlu0 %35
    %37 = vset.pattern.permute.xlu0 0
    %38 = vperm.xlu0 %37, %v29
    %v39 = vpop.permute.xlu0 %38
    %vm40 = vcmp.eq.s32.totalorder %v36, %v33
    %vm41 = vcmp.eq.s32.totalorder %v39, %v33
    %v42 = vsel %vm40, 1, 0
    %v43 = vsel %vm41, 1, 0
    %v44 = vcvt.s32.f32 %v42
    %v45 = vcvt.s32.f32 %v43
    %v46 = vld [vmem:[#allocation2] sm:$0xff]
    %v47 = vld [vmem:[#allocation2 + $0x8] sm:$0xff]
    %v48 = vld [vmem:[#allocation2 + $0x10] sm:$0xff]
    %v49 = vld [vmem:[#allocation2 + $0x18] sm:$0xff]
    %v50 = vld [vmem:[#allocation2 + $0x20] sm:$0xff]
    %v51 = vld [vmem:[#allocation2 + $0x28] sm:$0xff]
    %v52 = vld [vmem:[#allocation2 + $0x30] sm:$0xff]
    %v53 = vld [vmem:[#allocation2 + $0x38] sm:$0xff]
    %v54 = vld [vmem:[#allocation2 + $0x40] sm:$0xff]
    %v55 = vld [vmem:[#allocation2 + $0x48] sm:$0xff]
    %v56 = vld [vmem:[#allocation2 + $0x50] sm:$0xff]
    %v57 = vld [vmem:[#allocation2 + $0x58] sm:$0xff]
    %v58 = vld [vmem:[#allocation2 + $0x60] sm:$0xff]
    %v59 = vld [vmem:[#allocation2 + $0x68] sm:$0xff]
    %v60 = vld [vmem:[#allocation2 + $0x70] sm:$0xff]
    %v61 = vld [vmem:[#allocation2 + $0x78] sm:$0xff]
    %62 = vmatpush.msra.mxu0 %v61
    %63 = vmatpush.msra.mxu0 %v60
    %64 = vmatpush.msra.mxu0 %v59
    %65 = vmatpush.msra.mxu0 %v58
    %66 = vmatpush.msra.mxu0 %v57
    %67 = vmatpush.msra.mxu0 %v56
    %68 = vmatpush.msra.mxu0 %v55
    %69 = vmatpush.msra.mxu0 %v54
    %70 = vmatpush.msra.mxu0 %v53
    %71 = vmatpush.msra.mxu0 %v52
    %72 = vmatpush.msra.mxu0 %v51
    %73 = vmatpush.msra.mxu0 %v50
    %74 = vmatpush.msra.mxu0 %v49
    %75 = vmatpush.msra.mxu0 %v48
    %76 = vmatpush.msra.mxu0 %v47
    %77 = vmatpush.msra.mxu0 %v46
    %78 = vmatmul.f32.gmra.mxu0 %v44
    %v79 = vpop.f32.mrf.mxu0
    %v80 = vadd.f32 0.0, %v79
    %81 = vmatmul.f32.gmra.mxu0 %v45
    %v82 = vpop.f32.mrf.mxu0
    %v83 = vadd.f32 0.0, %v82
    %84 = vdwg.mxu0
    %85 = vst [vmem:[#allocation5] sm:$0xff] %v80
    %86 = vst [vmem:[#allocation5 + $0x8] sm:$0xff] %v83
    // Predicated region
    $region14: #{tpu_custom_call.1} parent=1 // pred_check
      _
    $region15: #{tpu_custom_call.1} parent=1 // pred_check_branch
      %88 = sbr.rel (0) target = $region17
    $region16: #{tpu_custom_call.1} parent=1 // pred_region
      %90 = vsyncadd [#allocation4], 0
      %s91 = sshll.u32 [#allocation5], 4
      %s92 = int_to_ptr.vmem [resolvable:$true] %s91
      %s93 = sshll.u32 %s2, 4
      %s94 = int_to_ptr.hbm [resolvable:$true] %s93
      %99 = dma.vmem_to_hbm [thread:$0]  %s92, 256, %s94, [#allocation4], 128, 128, 8
    $region17: #{tpu_custom_call.1} parent=1 // pred_fallthru
      _
    // Predicated region
    $region18: #{tpu_custom_call.1} parent=1 // pred_check
      _
    $region19: #{tpu_custom_call.1} parent=1 // pred_check_branch
      %101 = sbr.rel (0) target = $region21
    $region20: #{tpu_custom_call.1} parent=1 // pred_region
      %103 = dma.done [#allocation4], 256
    $region21: #{tpu_custom_call.1} parent=1 // pred_fallthru
      _
    %104 = vsyncpa [#allocation3], 1
    %105 = vsyncpa [#allocation4], 1

</llo_original>
